<compile_context>
chip_gen: v7x
topology: tpu7x:2x2x1
jax: 0.10.0
libtpu: 0.0.40
codegen_flags: <defaults>
</compile_context>

<pallas_src>
import jax
import jax.numpy as jnp
from jax.experimental import pallas as pl
from jax.experimental.pallas import tpu as pltpu


# ----------------------------- one-time parameter prep ------------------------
def _permute_gates(w):
    """Reorder last-axis gate blocks from PyTorch (i, f, g, o) to (i, o, f, g)."""
    i, f, g, o = jnp.split(w, 4, axis=-1)
    return jnp.concatenate([i, o, f, g], axis=-1)


def fuse_lstm_params(params):
    """Call ONCE at parameter-init time (not per forward call).

    Returns bf16 gate-permuted weights (W_ih, W_hh kept separate so the
    zero-state path only streams W_ih) and the fused f32 bias.
    """
    H = params["w_hh"].shape[0]
    return {
        "w_ih": _permute_gates(params["w_ih"]).astype(jnp.bfloat16),   # [F, 4H]
        "w_hh": _permute_gates(params["w_hh"]).astype(jnp.bfloat16),   # [H, 4H]
        "bias": _permute_gates((params["b_ih"] + params["b_hh"])
                               .reshape(1, 4 * H)).astype(jnp.float32),  # [1, 4H]
        "n_hid": H,
    }


# ----------------------------- kernels -----------------------------------------
def _lstm_kernel_zero_state(x_ref, w_ih_ref, b_ref, h_out_ref, c_out_ref):
    """hc=None path: c_prev = 0, h_prev = 0  ->  only x @ W_ih is needed."""
    H = h_out_ref.shape[-1]
    x = x_ref[...].astype(jnp.bfloat16)
    gates = jnp.dot(x, w_ih_ref[...], preferred_element_type=jnp.float32)
    gates = gates + b_ref[...]                       # f32, columns: i | o | f | g
    # sigmoid(x) = 0.5*tanh(0.5*x) + 0.5 : single EUP op.  Forget gate skipped
    # (f*c_prev == 0).  i and o are the contiguous [:, :2H] slab.
    sig_io = jnp.tanh(0.5 * gates[:, :2 * H]) * 0.5 + 0.5
    i_g = sig_io[:, :H]
    o_g = sig_io[:, H:2 * H]
    g_g = jnp.tanh(gates[:, 3 * H:4 * H])
    c_new = i_g * g_g
    h_new = o_g * jnp.tanh(c_new)
    h_out_ref[...] = c_new * 0.0 + h_new  # keep stores unmasked full-block
    h_out_ref[...] = h_new
    c_out_ref[...] = c_new


def _lstm_kernel_with_state(x_ref, h_ref, c_ref, w_ih_ref, w_hh_ref, b_ref,
                            h_out_ref, c_out_ref):
    """General path with a provided (h, c) state."""
    H = h_out_ref.shape[-1]
    x = x_ref[...].astype(jnp.bfloat16)
    h = h_ref[...].astype(jnp.bfloat16)
    # Two accumulating MXU dots (no [TM, F+H] concat copy), f32 accumulation.
    gates = (jnp.dot(x, w_ih_ref[...], preferred_element_type=jnp.float32)
             + jnp.dot(h, w_hh_ref[...], preferred_element_type=jnp.float32)
             + b_ref[...])                           # columns: i | o | f | g
    sig = jnp.tanh(0.5 * gates[:, :3 * H]) * 0.5 + 0.5   # one contiguous slab
    i_g = sig[:, :H]
    o_g = sig[:, H:2 * H]
    f_g = sig[:, 2 * H:3 * H]
    g_g = jnp.tanh(gates[:, 3 * H:4 * H])
    c_new = f_g * c_ref[...] + i_g * g_g
    h_new = o_g * jnp.tanh(c_new)
    h_out_ref[...] = h_new
    c_out_ref[...] = c_new


# ----------------------------- wrapper ------------------------------------------
def lstm_cell_forward(inputs, fused_params, hc=None, *, block_rows=None):
    """Forward of LSTMCell: inputs [B, N, n_in] -> (h, c), each [B*N, n_hid].

    `fused_params` must come from fuse_lstm_params (called once at init).
    block_rows=None -> one grid step over the whole batch (best for v5e/v6e
    and for the weight-DMA-bound small-M regime); pass M//2 on v7x to shard
    across both TensorCores.
    """
    B, N, F = inputs.shape
    M = B * N
    H = fused_params["n_hid"]
    # Lane-dense fast path requires 128-aligned feature dims; sublane needs M%8==0.
    assert F % 128 == 0 and H % 128 == 0, "n_in and n_hid must be multiples of 128"
    if block_rows is None:
        block_rows = M
    assert M % block_rows == 0 and block_rows % 8 == 0

    x = inputs.reshape(M, F).astype(jnp.float32)
    grid = (M // block_rows,)
    w_ih = fused_params["w_ih"]
    w_hh = fused_params["w_hh"]
    bias = fused_params["bias"]

    row_spec_x = pl.BlockSpec((block_rows, F), lambda i: (i, 0))
    row_spec_h = pl.BlockSpec((block_rows, H), lambda i: (i, 0))
    w_ih_spec = pl.BlockSpec((F, 4 * H), lambda i: (0, 0))
    w_hh_spec = pl.BlockSpec((H, 4 * H), lambda i: (0, 0))
    b_spec = pl.BlockSpec((1, 4 * H), lambda i: (0, 0))
    out_specs = (pl.BlockSpec((block_rows, H), lambda i: (i, 0)),
                 pl.BlockSpec((block_rows, H), lambda i: (i, 0)))
    out_shape = (jax.ShapeDtypeStruct((M, H), jnp.float32),
                 jax.ShapeDtypeStruct((M, H), jnp.float32))
    cparams = pltpu.CompilerParams(dimension_semantics=("parallel",))

    if hc is None:
        # Specialized zero-state kernel: no h0/c0 streams, only W_ih.
        return pl.pallas_call(
            _lstm_kernel_zero_state,
            out_shape=out_shape,
            grid=grid,
            in_specs=[row_spec_x, w_ih_spec, b_spec],
            out_specs=out_specs,
            compiler_params=cparams,
        )(x, w_ih, bias)

    h0, c0 = hc
    h0 = jnp.asarray(h0, jnp.float32).reshape(M, H)
    c0 = jnp.asarray(c0, jnp.float32).reshape(M, H)
    return pl.pallas_call(
        _lstm_kernel_with_state,
        out_shape=out_shape,
        grid=grid,
        in_specs=[row_spec_x, row_spec_h, row_spec_h, w_ih_spec, w_hh_spec, b_spec],
        out_specs=out_specs,
        compiler_params=cparams,
    )(x, h0, c0, w_ih, w_hh, bias)


# ----------------------------- pure-JAX reference (f32, PyTorch gate order) ------
def reference_forward(inputs, params, hc=None):
    B, N, F = inputs.shape
    M = B * N
    H = params["w_hh"].shape[0]
    x = inputs.reshape(M, F).astype(jnp.float32)
    if hc is None:
        h = jnp.zeros((M, H), jnp.float32)
        c = jnp.zeros((M, H), jnp.float32)
    else:
        h, c = (jnp.asarray(t, jnp.float32) for t in hc)
    gates = (x @ params["w_ih"] + params["b_ih"]
             + h @ params["w_hh"] + params["b_hh"])
    i_g = jax.nn.sigmoid(gates[:, :H])
    f_g = jax.nn.sigmoid(gates[:, H:2 * H])
    g_g = jnp.tanh(gates[:, 2 * H:3 * H])
    o_g = jax.nn.sigmoid(gates[:, 3 * H:])
    c_new = f_g * c + i_g * g_g
    h_new = o_g * jnp.tanh(c_new)
    return h_new, c_new


# ----------------------------- main ----------------------------------------------
if __name__ == "__main__":
    # Small but TPU-friendly shapes: n_hid = n_in = 128 keeps every gate slice
    # lane-dense; B*N = 128 rows (one full MXU-height tile).
    B, N = 4, 32
    n_in, n_hid = 128, 128

    key = jax.random.PRNGKey(0)
    k_in, k1, k2, k3, k4, kh, kc = jax.random.split(key, 7)
    inputs = jax.random.normal(k_in, (B, N, n_in), jnp.float32)

    # nn.LSTMCell parameters, stored transposed as [in, 4*n_hid], gate order i,f,g,o.
    params = {
        "w_ih": 0.2 * jax.random.normal(k1, (n_in, 4 * n_hid), jnp.float32),
        "w_hh": 0.2 * jax.random.normal(k2, (n_hid, 4 * n_hid), jnp.float32),
        "b_ih": 0.1 * jax.random.normal(k3, (4 * n_hid,), jnp.float32),
        "b_hh": 0.1 * jax.random.normal(k4, (4 * n_hid,), jnp.float32),
    }

    # One-time init-time fusion (NOT in the per-call path).
    fused = fuse_lstm_params(params)
    fused = jax.tree_util.tree_map(
        lambda t: jax.block_until_ready(t) if isinstance(t, jax.Array) else t, fused)

    # --- zero-state path (hc=None, as in the PyTorch forward default) ---
    h, c = lstm_cell_forward(inputs, fused, hc=None)
    h = jax.block_until_ready(h)
    c = jax.block_until_ready(c)
    h_ref, c_ref = reference_forward(inputs, params, hc=None)
    assert h.shape == (B * N, n_hid) and c.shape == (B * N, n_hid)
    assert jnp.allclose(h, h_ref, rtol=3e-2, atol=3e-2), float(jnp.max(jnp.abs(h - h_ref)))
    assert jnp.allclose(c, c_ref, rtol=3e-2, atol=3e-2), float(jnp.max(jnp.abs(c - c_ref)))

    # --- explicitly provided (h, c) state ---
    hc0 = (0.5 * jax.random.normal(kh, (B * N, n_hid), jnp.float32),
           0.5 * jax.random.normal(kc, (B * N, n_hid), jnp.float32))
    h2, c2 = lstm_cell_forward(inputs, fused, hc=hc0)
    h2 = jax.block_until_ready(h2)
    c2 = jax.block_until_ready(c2)
    h2_ref, c2_ref = reference_forward(inputs, params, hc=hc0)
    assert jnp.allclose(h2, h2_ref, rtol=3e-2, atol=3e-2), float(jnp.max(jnp.abs(h2 - h2_ref)))
    assert jnp.allclose(c2, c2_ref, rtol=3e-2, atol=3e-2), float(jnp.max(jnp.abs(c2 - c2_ref)))

    print("KERNEL_OK")
</pallas_src>

<mosaic_0001>
module attributes {stable_mosaic.version = 11 : i64} {
  func.func @_lstm_kernel_zero_state(%arg0: i32, %arg1: memref<128x128xf32, #tpu.memory_space<vmem>>, %arg2: memref<128x512xbf16, #tpu.memory_space<vmem>>, %arg3: memref<1x512xf32, #tpu.memory_space<vmem>>, %arg4: memref<128x128xf32, #tpu.memory_space<vmem>>, %arg5: memref<128x128xf32, #tpu.memory_space<vmem>>) attributes {dimension_semantics = [#tpu.dimension_semantics<parallel>], iteration_bounds = array<i64: 1>, scalar_prefetch = 0 : i64, scratch_operands = 0 : i64, tpu.core_type = #tpu.core_type<tc>, window_params = [{transform_indices = @transform_0, window_bounds = array<i64: 128, 128>}, {pipeline_mode = #tpu.pipeline_mode<synchronous>, transform_indices = @transform_1, window_bounds = array<i64: 128, 512>}, {pipeline_mode = #tpu.pipeline_mode<synchronous>, transform_indices = @transform_2, window_bounds = array<i64: 1, 512>}, {transform_indices = @transform_3, window_bounds = array<i64: 128, 128>}, {transform_indices = @transform_4, window_bounds = array<i64: 128, 128>}]} {
    %c0 = arith.constant 0 : index
    %c0_0 = arith.constant 0 : index
    %0 = vector.load %arg1[%c0, %c0_0] : memref<128x128xf32, #tpu.memory_space<vmem>>, vector<128x128xf32>
    %1 = arith.truncf %0 : vector<128x128xf32> to vector<128x128xbf16>
    %c0_1 = arith.constant 0 : index
    %c0_2 = arith.constant 0 : index
    %2 = vector.load %arg2[%c0_1, %c0_2] : memref<128x512xbf16, #tpu.memory_space<vmem>>, vector<128x512xbf16>
    %cst = arith.constant dense<0.000000e+00> : vector<128x512xf32>
    %3 = tpu.matmul %1, %2, %cst {dimension_numbers = #tpu.dot_dimension_numbers<[1], [0], [0], [1], [0, 0, 1, 1], [], []>} : vector<128x128xbf16>, vector<128x512xbf16>, vector<128x512xf32> -> vector<128x512xf32>
    %c0_3 = arith.constant 0 : index
    %c0_4 = arith.constant 0 : index
    %4 = vector.load %arg3[%c0_3, %c0_4] : memref<1x512xf32, #tpu.memory_space<vmem>>, vector<1x512xf32>
    %5 = vector.broadcast %4 : vector<1x512xf32> to vector<128x512xf32>
    %6 = arith.addf %3, %5 : vector<128x512xf32>
    %7 = vector.extract_strided_slice %6 {offsets = [0, 0], sizes = [128, 256], strides = [1, 1]} : vector<128x512xf32> to vector<128x256xf32>
    %cst_5 = arith.constant 5.000000e-01 : f32
    %8 = vector.broadcast %cst_5 : f32 to vector<128x256xf32>
    %9 = arith.mulf %8, %7 : vector<128x256xf32>
    %10 = math.tanh %9 : vector<128x256xf32>
    %cst_6 = arith.constant 5.000000e-01 : f32
    %11 = vector.broadcast %cst_6 : f32 to vector<128x256xf32>
    %12 = arith.mulf %10, %11 : vector<128x256xf32>
    %cst_7 = arith.constant 5.000000e-01 : f32
    %13 = vector.broadcast %cst_7 : f32 to vector<128x256xf32>
    %14 = arith.addf %12, %13 : vector<128x256xf32>
    %15 = vector.extract_strided_slice %14 {offsets = [0, 0], sizes = [128, 128], strides = [1, 1]} : vector<128x256xf32> to vector<128x128xf32>
    %16 = vector.extract_strided_slice %14 {offsets = [0, 128], sizes = [128, 128], strides = [1, 1]} : vector<128x256xf32> to vector<128x128xf32>
    %17 = vector.extract_strided_slice %6 {offsets = [0, 384], sizes = [128, 128], strides = [1, 1]} : vector<128x512xf32> to vector<128x128xf32>
    %18 = math.tanh %17 : vector<128x128xf32>
    %19 = arith.mulf %15, %18 : vector<128x128xf32>
    %20 = math.tanh %19 : vector<128x128xf32>
    %21 = arith.mulf %16, %20 : vector<128x128xf32>
    %cst_8 = arith.constant 0.000000e+00 : f32
    %22 = vector.broadcast %cst_8 : f32 to vector<128x128xf32>
    %23 = arith.mulf %19, %22 : vector<128x128xf32>
    %24 = arith.addf %23, %21 : vector<128x128xf32>
    %c0_9 = arith.constant 0 : index
    %c0_10 = arith.constant 0 : index
    %25 = vector.load %arg4[%c0_9, %c0_10] : memref<128x128xf32, #tpu.memory_space<vmem>>, vector<128x128xf32>
    tpu.vector_store %arg4[%c0_9, %c0_10], %24 {strides = array<i32>} : memref<128x128xf32, #tpu.memory_space<vmem>>, vector<128x128xf32>,
    %c0_11 = arith.constant 0 : index
    %c0_12 = arith.constant 0 : index
    %26 = vector.load %arg4[%c0_11, %c0_12] : memref<128x128xf32, #tpu.memory_space<vmem>>, vector<128x128xf32>
    tpu.vector_store %arg4[%c0_11, %c0_12], %21 {strides = array<i32>} : memref<128x128xf32, #tpu.memory_space<vmem>>, vector<128x128xf32>,
    %c0_13 = arith.constant 0 : index
    %c0_14 = arith.constant 0 : index
    %27 = vector.load %arg5[%c0_13, %c0_14] : memref<128x128xf32, #tpu.memory_space<vmem>>, vector<128x128xf32>
    tpu.vector_store %arg5[%c0_13, %c0_14], %19 {strides = array<i32>} : memref<128x128xf32, #tpu.memory_space<vmem>>, vector<128x128xf32>,
    return
  }
  func.func @transform_0(%arg0: i32) -> (i32, i32) {
    %c0_i32 = arith.constant 0 : i32
    %c0_i32_0 = arith.constant 0 : i32
    return %arg0, %c0_i32 : i32, i32
  }
  func.func @transform_1(%arg0: i32) -> (i32, i32) {
    %c0_i32 = arith.constant 0 : i32
    %c0_i32_0 = arith.constant 0 : i32
    %c0_i32_1 = arith.constant 0 : i32
    return %c0_i32, %c0_i32_0 : i32, i32
  }
  func.func @transform_2(%arg0: i32) -> (i32, i32) {
    %c0_i32 = arith.constant 0 : i32
    %c0_i32_0 = arith.constant 0 : i32
    %c0_i32_1 = arith.constant 0 : i32
    return %c0_i32, %c0_i32_0 : i32, i32
  }
  func.func @transform_3(%arg0: i32) -> (i32, i32) {
    %c0_i32 = arith.constant 0 : i32
    %c0_i32_0 = arith.constant 0 : i32
    return %arg0, %c0_i32 : i32, i32
  }
  func.func @transform_4(%arg0: i32) -> (i32, i32) {
    %c0_i32 = arith.constant 0 : i32
    %c0_i32_0 = arith.constant 0 : i32
    return %arg0, %c0_i32 : i32, i32
  }
}

</mosaic_0001>

<llo_original>
// kernel: tpu_custom_call.1
$region0: #{tpu_custom_call.1}
  #allocation0 [shape = 'u32[]', space=smem, size = 0x4, offset = 0x4, fixed_abs, tag = 'smem constant byte address 0x4 - core index']
  #allocation1 [shape = 'u32[144,128]{1,0:T(1,128)}', space=vmem, size = 0x12000, scoped, tag = 'internal scratch']
  %s0 = inlined_call_operand.hbm [shape: f32[128,128], index: 0, kind: input, shape index: {}]
  %s1 = inlined_call_operand.hbm [shape: bf16[128,512], index: 1, kind: input, shape index: {}]
  %s2 = inlined_call_operand.vmem [shape: f32[1,512], index: 2, kind: input, shape index: {}]
  %s3 = inlined_call_operand.hbm [shape: f32[128,128], index: 3, kind: output, shape index: {0}]
  %s4 = inlined_call_operand.hbm [shape: f32[128,128], index: 4, kind: output, shape index: {1}]
  %5 = xla_tuple %s3, %s4
  %s6 = sld [smem:[#allocation0]]
  $region38: #{tpu_custom_call.1} parent=0
    _
  %s8 = ssub.s32 1, %s6
  %s9 = scalar_select 0, %s8, %s6
  $region1: #{tpu_custom_call.1} parent=0
    #allocation2 [shape = 'u8[65536]{0}', space=vmem, size = 0x10000, scoped, tag = 'input window, operand 0, single buffered']
    #allocation3 [shape = 's32[1]{0}', space=sflag, size = 0x4, scoped, tag = 'scoped memory for tpu_custom_call.1']
    #allocation4 [shape = 's32[1]{0}', space=sflag, size = 0x4, scoped, tag = 'scoped memory for tpu_custom_call.1']
    #allocation5 [shape = 'u8[131072]{0}', space=vmem, size = 0x20000, scoped, tag = 'input window, operand 1, single buffered']
    #allocation6 [shape = 's32[1]{0}', space=sflag, size = 0x4, scoped, tag = 'scoped memory for tpu_custom_call.1']
    #allocation7 [shape = 'u8[65536]{0}', space=vmem, size = 0x10000, scoped, tag = 'output window, operand 0, single buffered']
    #allocation8 [shape = 'u8[65536]{0}', space=vmem, size = 0x10000, scoped, tag = 'output window, operand 1, single buffered']
    #allocation9 [shape = 's32[1]{0}', space=sflag, size = 0x4, scoped, tag = 'scoped memory for tpu_custom_call.1']
    %10 = vsyncpa [#allocation3], 0
    %11 = vsyncpa [#allocation6], 0
    %12 = vsyncpa [#allocation4], 0
    %13 = vsyncpa [#allocation9], 0
    // Predicated region
    $region2: #{tpu_custom_call.1} parent=1 // pred_check
      _
    $region3: #{tpu_custom_call.1} parent=1 // pred_check_branch
      %15 = sbr.rel (0) target = $region5
    $region4: #{tpu_custom_call.1} parent=1 // pred_region
      %s17 = ssub.s32 2048, 2048
      %18 = vsyncadd [#allocation3], %s17
      %s19 = sshll.u32 [#allocation2], 4
      %s20 = int_to_ptr.vmem [resolvable:$true] %s19
      %25 = dma.hbm_to_vmem [thread:$0]  %s0, 2048, %s20, [#allocation3], 128, 128, 8
    $region5: #{tpu_custom_call.1} parent=1 // pred_fallthru
      _
    // Predicated region
    $region6: #{tpu_custom_call.1} parent=1 // pred_check
      _
    $region7: #{tpu_custom_call.1} parent=1 // pred_check_branch
      %27 = sbr.rel (0) target = $region9
    $region8: #{tpu_custom_call.1} parent=1 // pred_region
      %s29 = ssub.s32 4096, 4096
      %30 = vsyncadd [#allocation6], %s29
      %s31 = sshll.u32 [#allocation5], 4
      %s32 = int_to_ptr.vmem [resolvable:$true] %s31
      %37 = dma.hbm_to_vmem [thread:$0]  %s1, 4096, %s32, [#allocation6], 256, 256, 16
    $region9: #{tpu_custom_call.1} parent=1 // pred_fallthru
      _
    // Predicated region
    $region10: #{tpu_custom_call.1} parent=1 // pred_check
      _
    $region11: #{tpu_custom_call.1} parent=1 // pred_check_branch
      %39 = sbr.rel (0) target = $region13
    $region12: #{tpu_custom_call.1} parent=1 // pred_region
      _
    $region13: #{tpu_custom_call.1} parent=1 // pred_fallthru
      _
    // Predicated region
    $region14: #{tpu_custom_call.1} parent=1 // pred_check
      _
    $region15: #{tpu_custom_call.1} parent=1 // pred_check_branch
      %41 = sbr.rel (0) target = $region17
    $region16: #{tpu_custom_call.1} parent=1 // pred_region
      %42 = dma.done [#allocation3], 2048
    $region17: #{tpu_custom_call.1} parent=1 // pred_fallthru
      _
    // Predicated region
    $region18: #{tpu_custom_call.1} parent=1 // pred_check
      _
    $region19: #{tpu_custom_call.1} parent=1 // pred_check_branch
      %44 = sbr.rel (0) target = $region21
    $region20: #{tpu_custom_call.1} parent=1 // pred_region
      %45 = dma.done [#allocation6], 4096
    $region21: #{tpu_custom_call.1} parent=1 // pred_fallthru
      _
    %v47 = vld [vmem:[#allocation2] sm:$0xff]
    %v48 = vld [vmem:[#allocation2 + $0x8] sm:$0xff]
    %v49 = vld [vmem:[#allocation2 + $0x10] sm:$0xff]
    %v50 = vld [vmem:[#allocation2 + $0x18] sm:$0xff]
    %v51 = vld [vmem:[#allocation2 + $0x20] sm:$0xff]
    %v52 = vld [vmem:[#allocation2 + $0x28] sm:$0xff]
    %v53 = vld [vmem:[#allocation2 + $0x30] sm:$0xff]
    %v54 = vld [vmem:[#allocation2 + $0x38] sm:$0xff]
    %v55 = vld [vmem:[#allocation2 + $0x40] sm:$0xff]
    %v56 = vld [vmem:[#allocation2 + $0x48] sm:$0xff]
    %v57 = vld [vmem:[#allocation2 + $0x50] sm:$0xff]
    %v58 = vld [vmem:[#allocation2 + $0x58] sm:$0xff]
    %v59 = vld [vmem:[#allocation2 + $0x60] sm:$0xff]
    %v60 = vld [vmem:[#allocation2 + $0x68] sm:$0xff]
    %v61 = vld [vmem:[#allocation2 + $0x70] sm:$0xff]
    %v62 = vld [vmem:[#allocation2 + $0x78] sm:$0xff]
    %v63 = vpack.c.bf16 %v48, %v47
    %v64 = vpack.c.bf16 %v50, %v49
    %v65 = vpack.c.bf16 %v52, %v51
    %v66 = vpack.c.bf16 %v54, %v53
    %v67 = vpack.c.bf16 %v56, %v55
    %v68 = vpack.c.bf16 %v58, %v57
    %v69 = vpack.c.bf16 %v60, %v59
    %v70 = vpack.c.bf16 %v62, %v61
    %v71 = vld [vmem:[#allocation5] sm:$0xff]
    %v72 = vld [vmem:[#allocation5 + $0x8] sm:$0xff]
    %v73 = vld [vmem:[#allocation5 + $0x10] sm:$0xff]
    %v74 = vld [vmem:[#allocation5 + $0x18] sm:$0xff]
    %v75 = vld [vmem:[#allocation5 + $0x20] sm:$0xff]
    %v76 = vld [vmem:[#allocation5 + $0x28] sm:$0xff]
    %v77 = vld [vmem:[#allocation5 + $0x30] sm:$0xff]
    %v78 = vld [vmem:[#allocation5 + $0x38] sm:$0xff]
    %v79 = vld [vmem:[#allocation5 + $0x40] sm:$0xff]
    %v80 = vld [vmem:[#allocation5 + $0x48] sm:$0xff]
    %v81 = vld [vmem:[#allocation5 + $0x50] sm:$0xff]
    %v82 = vld [vmem:[#allocation5 + $0x58] sm:$0xff]
    %v83 = vld [vmem:[#allocation5 + $0x60] sm:$0xff]
    %v84 = vld [vmem:[#allocation5 + $0x68] sm:$0xff]
    %v85 = vld [vmem:[#allocation5 + $0x70] sm:$0xff]
    %v86 = vld [vmem:[#allocation5 + $0x78] sm:$0xff]
    %v87 = vld [vmem:[#allocation5 + $0x80] sm:$0xff]
    %v88 = vld [vmem:[#allocation5 + $0x88] sm:$0xff]
    %v89 = vld [vmem:[#allocation5 + $0x90] sm:$0xff]
    %v90 = vld [vmem:[#allocation5 + $0x98] sm:$0xff]
    %v91 = vld [vmem:[#allocation5 + $0xa0] sm:$0xff]
    %v92 = vld [vmem:[#allocation5 + $0xa8] sm:$0xff]
    %v93 = vld [vmem:[#allocation5 + $0xb0] sm:$0xff]
    %v94 = vld [vmem:[#allocation5 + $0xb8] sm:$0xff]
    %v95 = vld [vmem:[#allocation5 + $0xc0] sm:$0xff]
    %v96 = vld [vmem:[#allocation5 + $0xc8] sm:$0xff]
    %v97 = vld [vmem:[#allocation5 + $0xd0] sm:$0xff]
    %v98 = vld [vmem:[#allocation5 + $0xd8] sm:$0xff]
    %v99 = vld [vmem:[#allocation5 + $0xe0] sm:$0xff]
    %v100 = vld [vmem:[#allocation5 + $0xe8] sm:$0xff]
    %v101 = vld [vmem:[#allocation5 + $0xf0] sm:$0xff]
    %v102 = vld [vmem:[#allocation5 + $0xf8] sm:$0xff]
    %v103 = vld [vmem:[%s2] sm:$0xf]
    %v105 = vlaneseq
    %v106 = vshrl.u32 %v105, 7
    %v107 = vsub.s32 0, %v106
    %v108 = vrot.slane %v103, %v107
    %v109 = vlaneseq
    %v110 = vshrl.u32 %v109, 7
    %v111 = vsub.s32 1, %v110
    %v112 = vrot.slane %v103, %v111
    %v113 = vlaneseq
    %v114 = vshrl.u32 %v113, 7
    %v115 = vsub.s32 3, %v114
    %v116 = vrot.slane %v103, %v115
    %v152 = vunpack.c.l.b16 %v71
    %v153 = vunpack.c.h.b16 %v71
    %v154 = vunpack.c.l.b16 %v72
    %v155 = vunpack.c.h.b16 %v72
    %v156 = vunpack.c.l.b16 %v73
    %v157 = vunpack.c.h.b16 %v73
    %v158 = vunpack.c.l.b16 %v74
    %v159 = vunpack.c.h.b16 %v74
    %v160 = vunpack.c.l.b16 %v75
    %v161 = vunpack.c.h.b16 %v75
    %v162 = vunpack.c.l.b16 %v76
    %v163 = vunpack.c.h.b16 %v76
    %v164 = vunpack.c.l.b16 %v77
    %v165 = vunpack.c.h.b16 %v77
    %v166 = vunpack.c.l.b16 %v78
    %v167 = vunpack.c.h.b16 %v78
    %v168 = vunpack.c.l.b16 %v79
    %v169 = vunpack.c.h.b16 %v79
    %v170 = vunpack.c.l.b16 %v80
    %v171 = vunpack.c.h.b16 %v80
    %v172 = vunpack.c.l.b16 %v81
    %v173 = vunpack.c.h.b16 %v81
    %v174 = vunpack.c.l.b16 %v82
    %v175 = vunpack.c.h.b16 %v82
    %v176 = vunpack.c.l.b16 %v83
    %v177 = vunpack.c.h.b16 %v83
    %v178 = vunpack.c.l.b16 %v84
    %v179 = vunpack.c.h.b16 %v84
    %v180 = vunpack.c.l.b16 %v85
    %v181 = vunpack.c.h.b16 %v85
    %v182 = vunpack.c.l.b16 %v86
    %v183 = vunpack.c.h.b16 %v86
    %v184 = vunpack.c.l.b16 %v87
    %v185 = vunpack.c.h.b16 %v87
    %v186 = vunpack.c.l.b16 %v88
    %v187 = vunpack.c.h.b16 %v88
    %v188 = vunpack.c.l.b16 %v89
    %v189 = vunpack.c.h.b16 %v89
    %v190 = vunpack.c.l.b16 %v90
    %v191 = vunpack.c.h.b16 %v90
    %v192 = vunpack.c.l.b16 %v91
    %v193 = vunpack.c.h.b16 %v91
    %v194 = vunpack.c.l.b16 %v92
    %v195 = vunpack.c.h.b16 %v92
    %v196 = vunpack.c.l.b16 %v93
    %v197 = vunpack.c.h.b16 %v93
    %v198 = vunpack.c.l.b16 %v94
    %v199 = vunpack.c.h.b16 %v94
    %v200 = vunpack.c.l.b16 %v95
    %v201 = vunpack.c.h.b16 %v95
    %v202 = vunpack.c.l.b16 %v96
    %v203 = vunpack.c.h.b16 %v96
    %v204 = vunpack.c.l.b16 %v97
    %v205 = vunpack.c.h.b16 %v97
    %v206 = vunpack.c.l.b16 %v98
    %v207 = vunpack.c.h.b16 %v98
    %v208 = vunpack.c.l.b16 %v99
    %v209 = vunpack.c.h.b16 %v99
    %v210 = vunpack.c.l.b16 %v100
    %v211 = vunpack.c.h.b16 %v100
    %v212 = vunpack.c.l.b16 %v101
    %v213 = vunpack.c.h.b16 %v101
    %v214 = vunpack.c.l.b16 %v102
    %v215 = vunpack.c.h.b16 %v102
    %v216 = vpack.c.b16 %v156, %v152
    %v217 = vpack.c.b16 %v157, %v153
    %v218 = vpack.c.b16 %v158, %v154
    %v219 = vpack.c.b16 %v159, %v155
    %v220 = vpack.c.b16 %v164, %v160
    %v221 = vpack.c.b16 %v165, %v161
    %v222 = vpack.c.b16 %v166, %v162
    %v223 = vpack.c.b16 %v167, %v163
    %v224 = vpack.c.b16 %v172, %v168
    %v225 = vpack.c.b16 %v173, %v169
    %v226 = vpack.c.b16 %v174, %v170
    %v227 = vpack.c.b16 %v175, %v171
    %v228 = vpack.c.b16 %v180, %v176
    %v229 = vpack.c.b16 %v181, %v177
    %v230 = vpack.c.b16 %v182, %v178
    %v231 = vpack.c.b16 %v183, %v179
    %v232 = vpack.c.b16 %v188, %v184
    %v233 = vpack.c.b16 %v189, %v185
    %v234 = vpack.c.b16 %v190, %v186
    %v235 = vpack.c.b16 %v191, %v187
    %v236 = vpack.c.b16 %v196, %v192
    %v237 = vpack.c.b16 %v197, %v193
    %v238 = vpack.c.b16 %v198, %v194
    %v239 = vpack.c.b16 %v199, %v195
    %v240 = vpack.c.b16 %v204, %v200
    %v241 = vpack.c.b16 %v205, %v201
    %v242 = vpack.c.b16 %v206, %v202
    %v243 = vpack.c.b16 %v207, %v203
    %v244 = vpack.c.b16 %v212, %v208
    %v245 = vpack.c.b16 %v213, %v209
    %v246 = vpack.c.b16 %v214, %v210
    %v247 = vpack.c.b16 %v215, %v211
    %280 = vmatprep.subr.bf16.mxu0 %v217
    %281 = vmatpush1.bf16.msra.mxu0 %v216
    %282 = vmatprep.subr.bf16.mxu0 %v221
    %283 = vmatpush1.bf16.msra.mxu0 %v220
    %284 = vmatprep.subr.bf16.mxu0 %v225
    %285 = vmatpush1.bf16.msra.mxu0 %v224
    %286 = vmatprep.subr.bf16.mxu0 %v229
    %287 = vmatpush1.bf16.msra.mxu0 %v228
    %288 = vmatprep.subr.bf16.mxu0 %v233
    %289 = vmatpush1.bf16.msra.mxu0 %v232
    %290 = vmatprep.subr.bf16.mxu0 %v237
    %291 = vmatpush1.bf16.msra.mxu0 %v236
    %292 = vmatprep.subr.bf16.mxu0 %v241
    %293 = vmatpush1.bf16.msra.mxu0 %v240
    %294 = vmatprep.subr.bf16.mxu0 %v245
    %295 = vmatpush1.bf16.msra.mxu0 %v244
    %296 = vmatprep.subr.bf16.mxu0 0
    %297 = vmatpush1.bf16.msra.mxu0 0
    %298 = vmatprep.subr.bf16.mxu0 0
    %299 = vmatpush1.bf16.msra.mxu0 0
    %300 = vmatprep.subr.bf16.mxu0 0
    %301 = vmatpush1.bf16.msra.mxu0 0
    %302 = vmatprep.subr.bf16.mxu0 0
    %303 = vmatpush1.bf16.msra.mxu0 0
    %304 = vmatprep.subr.bf16.mxu0 0
    %305 = vmatpush1.bf16.msra.mxu0 0
    %306 = vmatprep.subr.bf16.mxu0 0
    %307 = vmatpush1.bf16.msra.mxu0 0
    %308 = vmatprep.subr.bf16.mxu0 0
    %309 = vmatpush1.bf16.msra.mxu0 0
    %310 = vmatprep.subr.bf16.mxu0 0
    %311 = vmatpush1.bf16.msra.mxu0 0
    %312 = vmatprep.mubr.bf16.mxu0 0
    %313 = vmatmul.mubr.bf16.gmra.mrb[0].mxu0 %v63
    %v314 = vpop.f32.mrb[0].mxu0
    %v315 = vadd.f32 %v108, %v314
    %v316 = vpop.f32.mrb[0].mxu0
    %v317 = vadd.f32 %v112, %v316
    %v318 = vpop.f32.mrb[0].mxu0
    %v319 = vadd.f32 %v108, %v318
    %v320 = vpop.f32.mrb[0].mxu0
    %v321 = vadd.f32 %v112, %v320
    %322 = vmatprep.mubr.bf16.mxu0 0
    %323 = vmatmul.mubr.bf16.gmra.mrb[0].mxu0 %v64
    %v324 = vpop.f32.mrb[0].mxu0
    %v325 = vadd.f32 %v108, %v324
    %v326 = vpop.f32.mrb[0].mxu0
    %v327 = vadd.f32 %v112, %v326
    %v328 = vpop.f32.mrb[0].mxu0
    %v329 = vadd.f32 %v108, %v328
    %v330 = vpop.f32.mrb[0].mxu0
    %v331 = vadd.f32 %v112, %v330
    %332 = vmatprep.mubr.bf16.mxu0 0
    %333 = vmatmul.mubr.bf16.gmra.mrb[0].mxu0 %v65
    %v334 = vpop.f32.mrb[0].mxu0
    %v335 = vadd.f32 %v108, %v334
    %v336 = vpop.f32.mrb[0].mxu0
    %v337 = vadd.f32 %v112, %v336
    %v338 = vpop.f32.mrb[0].mxu0
    %v339 = vadd.f32 %v108, %v338
    %v340 = vpop.f32.mrb[0].mxu0
    %v341 = vadd.f32 %v112, %v340
    %342 = vmatprep.mubr.bf16.mxu0 0
    %343 = vmatmul.mubr.bf16.gmra.mrb[0].mxu0 %v66
    %v344 = vpop.f32.mrb[0].mxu0
    %v345 = vadd.f32 %v108, %v344
    %v346 = vpop.f32.mrb[0].mxu0
    %v347 = vadd.f32 %v112, %v346
    %v348 = vpop.f32.mrb[0].mxu0
    %v349 = vadd.f32 %v108, %v348
    %v350 = vpop.f32.mrb[0].mxu0
    %v351 = vadd.f32 %v112, %v350
    %352 = vmatprep.mubr.bf16.mxu0 0
    %353 = vmatmul.mubr.bf16.gmra.mrb[0].mxu0 %v67
    %v354 = vpop.f32.mrb[0].mxu0
    %v355 = vadd.f32 %v108, %v354
    %v356 = vpop.f32.mrb[0].mxu0
    %v357 = vadd.f32 %v112, %v356
    %v358 = vpop.f32.mrb[0].mxu0
    %v359 = vadd.f32 %v108, %v358
    %v360 = vpop.f32.mrb[0].mxu0
    %v361 = vadd.f32 %v112, %v360
    %362 = vmatprep.mubr.bf16.mxu0 0
    %363 = vmatmul.mubr.bf16.gmra.mrb[0].mxu0 %v68
    %v364 = vpop.f32.mrb[0].mxu0
    %v365 = vadd.f32 %v108, %v364
    %v366 = vpop.f32.mrb[0].mxu0
    %v367 = vadd.f32 %v112, %v366
    %v368 = vpop.f32.mrb[0].mxu0
    %v369 = vadd.f32 %v108, %v368
    %v370 = vpop.f32.mrb[0].mxu0
    %v371 = vadd.f32 %v112, %v370
    %372 = vmatprep.mubr.bf16.mxu0 0
    %373 = vmatmul.mubr.bf16.gmra.mrb[0].mxu0 %v69
    %v374 = vpop.f32.mrb[0].mxu0
    %v375 = vadd.f32 %v108, %v374
    %v376 = vpop.f32.mrb[0].mxu0
    %v377 = vadd.f32 %v112, %v376
    %v378 = vpop.f32.mrb[0].mxu0
    %v379 = vadd.f32 %v108, %v378
    %v380 = vpop.f32.mrb[0].mxu0
    %v381 = vadd.f32 %v112, %v380
    %382 = vmatprep.mubr.bf16.mxu0 0
    %383 = vmatmul.mubr.bf16.gmra.mrb[0].mxu0 %v70
    %v384 = vpop.f32.mrb[0].mxu0
    %v385 = vadd.f32 %v108, %v384
    %v386 = vpop.f32.mrb[0].mxu0
    %v387 = vadd.f32 %v112, %v386
    %v388 = vpop.f32.mrb[0].mxu0
    %v389 = vadd.f32 %v108, %v388
    %v390 = vpop.f32.mrb[0].mxu0
    %v391 = vadd.f32 %v112, %v390
    %392 = vdwg.mxu0
    %393 = vmatprep.subr.bf16.mxu0 %v219
    %394 = vmatpush1.bf16.msra.mxu0 %v218
    %395 = vmatprep.subr.bf16.mxu0 %v223
    %396 = vmatpush1.bf16.msra.mxu0 %v222
    %397 = vmatprep.subr.bf16.mxu0 %v227
    %398 = vmatpush1.bf16.msra.mxu0 %v226
    %399 = vmatprep.subr.bf16.mxu0 %v231
    %400 = vmatpush1.bf16.msra.mxu0 %v230
    %401 = vmatprep.subr.bf16.mxu0 %v235
    %402 = vmatpush1.bf16.msra.mxu0 %v234
    %403 = vmatprep.subr.bf16.mxu0 %v239
    %404 = vmatpush1.bf16.msra.mxu0 %v238
    %405 = vmatprep.subr.bf16.mxu0 %v243
    %406 = vmatpush1.bf16.msra.mxu0 %v242
    %407 = vmatprep.subr.bf16.mxu0 %v247
    %408 = vmatpush1.bf16.msra.mxu0 %v246
    %409 = vmatprep.subr.bf16.mxu0 0
    %410 = vmatpush1.bf16.msra.mxu0 0
    %411 = vmatprep.subr.bf16.mxu0 0
    %412 = vmatpush1.bf16.msra.mxu0 0
    %413 = vmatprep.subr.bf16.mxu0 0
    %414 = vmatpush1.bf16.msra.mxu0 0
    %415 = vmatprep.subr.bf16.mxu0 0
    %416 = vmatpush1.bf16.msra.mxu0 0
    %417 = vmatprep.subr.bf16.mxu0 0
    %418 = vmatpush1.bf16.msra.mxu0 0
    %419 = vmatprep.subr.bf16.mxu0 0
    %420 = vmatpush1.bf16.msra.mxu0 0
    %421 = vmatprep.subr.bf16.mxu0 0
    %422 = vmatpush1.bf16.msra.mxu0 0
    %423 = vmatprep.subr.bf16.mxu0 0
    %424 = vmatpush1.bf16.msra.mxu0 0
    %425 = vmatprep.mubr.bf16.mxu0 0
    %426 = vmatmul.mubr.bf16.gmra.mrb[0].mxu0 %v63
    %v427 = vpop.f32.mrb[0].mxu0
    %v428 = vpop.f32.mrb[0].mxu0
    %v429 = vadd.f32 %v116, %v428
    %v430 = vpop.f32.mrb[0].mxu0
    %v431 = vpop.f32.mrb[0].mxu0
    %v432 = vadd.f32 %v116, %v431
    %433 = vmatprep.mubr.bf16.mxu0 0
    %434 = vmatmul.mubr.bf16.gmra.mrb[0].mxu0 %v64
    %v435 = vpop.f32.mrb[0].mxu0
    %v436 = vpop.f32.mrb[0].mxu0
    %v437 = vadd.f32 %v116, %v436
    %v438 = vpop.f32.mrb[0].mxu0
    %v439 = vpop.f32.mrb[0].mxu0
    %v440 = vadd.f32 %v116, %v439
    %441 = vmatprep.mubr.bf16.mxu0 0
    %442 = vmatmul.mubr.bf16.gmra.mrb[0].mxu0 %v65
    %v443 = vpop.f32.mrb[0].mxu0
    %v444 = vpop.f32.mrb[0].mxu0
    %v445 = vadd.f32 %v116, %v444
    %v446 = vpop.f32.mrb[0].mxu0
    %v447 = vpop.f32.mrb[0].mxu0
    %v448 = vadd.f32 %v116, %v447
    %449 = vmatprep.mubr.bf16.mxu0 0
    %450 = vmatmul.mubr.bf16.gmra.mrb[0].mxu0 %v66
    %v451 = vpop.f32.mrb[0].mxu0
    %v452 = vpop.f32.mrb[0].mxu0
    %v453 = vadd.f32 %v116, %v452
    %v454 = vpop.f32.mrb[0].mxu0
    %v455 = vpop.f32.mrb[0].mxu0
    %v456 = vadd.f32 %v116, %v455
    %457 = vmatprep.mubr.bf16.mxu0 0
    %458 = vmatmul.mubr.bf16.gmra.mrb[0].mxu0 %v67
    %v459 = vpop.f32.mrb[0].mxu0
    %v460 = vpop.f32.mrb[0].mxu0
    %v461 = vadd.f32 %v116, %v460
    %v462 = vpop.f32.mrb[0].mxu0
    %v463 = vpop.f32.mrb[0].mxu0
    %v464 = vadd.f32 %v116, %v463
    %465 = vmatprep.mubr.bf16.mxu0 0
    %466 = vmatmul.mubr.bf16.gmra.mrb[0].mxu0 %v68
    %v467 = vpop.f32.mrb[0].mxu0
    %v468 = vpop.f32.mrb[0].mxu0
    %v469 = vadd.f32 %v116, %v468
    %v470 = vpop.f32.mrb[0].mxu0
    %v471 = vpop.f32.mrb[0].mxu0
    %v472 = vadd.f32 %v116, %v471
    %473 = vmatprep.mubr.bf16.mxu0 0
    %474 = vmatmul.mubr.bf16.gmra.mrb[0].mxu0 %v69
    %v475 = vpop.f32.mrb[0].mxu0
    %v476 = vpop.f32.mrb[0].mxu0
    %v477 = vadd.f32 %v116, %v476
    %v478 = vpop.f32.mrb[0].mxu0
    %v479 = vpop.f32.mrb[0].mxu0
    %v480 = vadd.f32 %v116, %v479
    %481 = vmatprep.mubr.bf16.mxu0 0
    %482 = vmatmul.mubr.bf16.gmra.mrb[0].mxu0 %v70
    %v483 = vpop.f32.mrb[0].mxu0
    %v484 = vpop.f32.mrb[0].mxu0
    %v485 = vadd.f32 %v116, %v484
    %v486 = vpop.f32.mrb[0].mxu0
    %v487 = vpop.f32.mrb[0].mxu0
    %v488 = vadd.f32 %v116, %v487
    %489 = vdwg.mxu0
    %v490 = vmul.f32 %v315, 0.5
    %v491 = vmul.f32 %v317, 0.5
    %v492 = vmul.f32 %v319, 0.5
    %v493 = vmul.f32 %v321, 0.5
    %v494 = vmul.f32 %v325, 0.5
    %v495 = vmul.f32 %v327, 0.5
    %v496 = vmul.f32 %v329, 0.5
    %v497 = vmul.f32 %v331, 0.5
    %v498 = vmul.f32 %v335, 0.5
    %v499 = vmul.f32 %v337, 0.5
    %v500 = vmul.f32 %v339, 0.5
    %v501 = vmul.f32 %v341, 0.5
    %v502 = vmul.f32 %v345, 0.5
    %v503 = vmul.f32 %v347, 0.5
    %v504 = vmul.f32 %v349, 0.5
    %v505 = vmul.f32 %v351, 0.5
    %v506 = vmul.f32 %v355, 0.5
    %v507 = vmul.f32 %v357, 0.5
    %v508 = vmul.f32 %v359, 0.5
    %v509 = vmul.f32 %v361, 0.5
    %v510 = vmul.f32 %v365, 0.5
    %v511 = vmul.f32 %v367, 0.5
    %v512 = vmul.f32 %v369, 0.5
    %v513 = vmul.f32 %v371, 0.5
    %v514 = vmul.f32 %v375, 0.5
    %v515 = vmul.f32 %v377, 0.5
    %v516 = vmul.f32 %v379, 0.5
    %v517 = vmul.f32 %v381, 0.5
    %v518 = vmul.f32 %v385, 0.5
    %v519 = vmul.f32 %v387, 0.5
    %v520 = vmul.f32 %v389, 0.5
    %v521 = vmul.f32 %v391, 0.5
    %v522 = vtanh.pop %v490
    %v523 = vtanh.pop %v491
    %v524 = vtanh.pop %v492
    %v525 = vtanh.pop %v493
    %v526 = vtanh.pop %v494
    %v527 = vtanh.pop %v495
    %v528 = vtanh.pop %v496
    %v529 = vtanh.pop %v497
    %v530 = vtanh.pop %v498
    %v531 = vtanh.pop %v499
    %v532 = vtanh.pop %v500
    %v533 = vtanh.pop %v501
    %v534 = vtanh.pop %v502
    %v535 = vtanh.pop %v503
    %v536 = vtanh.pop %v504
    %v537 = vtanh.pop %v505
    %v538 = vtanh.pop %v506
    %v539 = vtanh.pop %v507
    %v540 = vtanh.pop %v508
    %v541 = vtanh.pop %v509
    %v542 = vtanh.pop %v510
    %v543 = vtanh.pop %v511
    %v544 = vtanh.pop %v512
    %v545 = vtanh.pop %v513
    %v546 = vtanh.pop %v514
    %v547 = vtanh.pop %v515
    %v548 = vtanh.pop %v516
    %v549 = vtanh.pop %v517
    %v550 = vtanh.pop %v518
    %v551 = vtanh.pop %v519
    %v552 = vtanh.pop %v520
    %v553 = vtanh.pop %v521
    %v554 = vmul.f32 %v522, 0.5
    %v555 = vmul.f32 %v523, 0.5
    %v556 = vmul.f32 %v524, 0.5
    %v557 = vmul.f32 %v525, 0.5
    %v558 = vmul.f32 %v526, 0.5
    %v559 = vmul.f32 %v527, 0.5
    %v560 = vmul.f32 %v528, 0.5
    %v561 = vmul.f32 %v529, 0.5
    %v562 = vmul.f32 %v530, 0.5
    %v563 = vmul.f32 %v531, 0.5
    %v564 = vmul.f32 %v532, 0.5
    %v565 = vmul.f32 %v533, 0.5
    %v566 = vmul.f32 %v534, 0.5
    %v567 = vmul.f32 %v535, 0.5
    %v568 = vmul.f32 %v536, 0.5
    %v569 = vmul.f32 %v537, 0.5
    %v570 = vmul.f32 %v538, 0.5
    %v571 = vmul.f32 %v539, 0.5
    %v572 = vmul.f32 %v540, 0.5
    %v573 = vmul.f32 %v541, 0.5
    %v574 = vmul.f32 %v542, 0.5
    %v575 = vmul.f32 %v543, 0.5
    %v576 = vmul.f32 %v544, 0.5
    %v577 = vmul.f32 %v545, 0.5
    %v578 = vmul.f32 %v546, 0.5
    %v579 = vmul.f32 %v547, 0.5
    %v580 = vmul.f32 %v548, 0.5
    %v581 = vmul.f32 %v549, 0.5
    %v582 = vmul.f32 %v550, 0.5
    %v583 = vmul.f32 %v551, 0.5
    %v584 = vmul.f32 %v552, 0.5
    %v585 = vmul.f32 %v553, 0.5
    %v586 = vadd.f32 %v554, 0.5
    %v587 = vadd.f32 %v555, 0.5
    %v588 = vadd.f32 %v556, 0.5
    %v589 = vadd.f32 %v557, 0.5
    %v590 = vadd.f32 %v558, 0.5
    %v591 = vadd.f32 %v559, 0.5
    %v592 = vadd.f32 %v560, 0.5
    %v593 = vadd.f32 %v561, 0.5
    %v594 = vadd.f32 %v562, 0.5
    %v595 = vadd.f32 %v563, 0.5
    %v596 = vadd.f32 %v564, 0.5
    %v597 = vadd.f32 %v565, 0.5
    %v598 = vadd.f32 %v566, 0.5
    %v599 = vadd.f32 %v567, 0.5
    %v600 = vadd.f32 %v568, 0.5
    %v601 = vadd.f32 %v569, 0.5
    %v602 = vadd.f32 %v570, 0.5
    %v603 = vadd.f32 %v571, 0.5
    %v604 = vadd.f32 %v572, 0.5
    %v605 = vadd.f32 %v573, 0.5
    %v606 = vadd.f32 %v574, 0.5
    %v607 = vadd.f32 %v575, 0.5
    %v608 = vadd.f32 %v576, 0.5
    %v609 = vadd.f32 %v577, 0.5
    %v610 = vadd.f32 %v578, 0.5
    %v611 = vadd.f32 %v579, 0.5
    %v612 = vadd.f32 %v580, 0.5
    %v613 = vadd.f32 %v581, 0.5
    %v614 = vadd.f32 %v582, 0.5
    %v615 = vadd.f32 %v583, 0.5
    %v616 = vadd.f32 %v584, 0.5
    %v617 = vadd.f32 %v585, 0.5
    %v618 = vtanh.pop %v429
    %v619 = vtanh.pop %v432
    %v620 = vtanh.pop %v437
    %v621 = vtanh.pop %v440
    %v622 = vtanh.pop %v445
    %v623 = vtanh.pop %v448
    %v624 = vtanh.pop %v453
    %v625 = vtanh.pop %v456
    %v626 = vtanh.pop %v461
    %v627 = vtanh.pop %v464
    %v628 = vtanh.pop %v469
    %v629 = vtanh.pop %v472
    %v630 = vtanh.pop %v477
    %v631 = vtanh.pop %v480
    %v632 = vtanh.pop %v485
    %v633 = vtanh.pop %v488
    %v634 = vmul.f32 %v586, %v618
    %v635 = vmul.f32 %v588, %v619
    %v636 = vmul.f32 %v590, %v620
    %v637 = vmul.f32 %v592, %v621
    %v638 = vmul.f32 %v594, %v622
    %v639 = vmul.f32 %v596, %v623
    %v640 = vmul.f32 %v598, %v624
    %v641 = vmul.f32 %v600, %v625
    %v642 = vmul.f32 %v602, %v626
    %v643 = vmul.f32 %v604, %v627
    %v644 = vmul.f32 %v606, %v628
    %v645 = vmul.f32 %v608, %v629
    %v646 = vmul.f32 %v610, %v630
    %v647 = vmul.f32 %v612, %v631
    %v648 = vmul.f32 %v614, %v632
    %v649 = vmul.f32 %v616, %v633
    %v650 = vtanh.pop %v634
    %v651 = vtanh.pop %v635
    %v652 = vtanh.pop %v636
    %v653 = vtanh.pop %v637
    %v654 = vtanh.pop %v638
    %v655 = vtanh.pop %v639
    %v656 = vtanh.pop %v640
    %v657 = vtanh.pop %v641
    %v658 = vtanh.pop %v642
    %v659 = vtanh.pop %v643
    %v660 = vtanh.pop %v644
    %v661 = vtanh.pop %v645
    %v662 = vtanh.pop %v646
    %v663 = vtanh.pop %v647
    %v664 = vtanh.pop %v648
    %v665 = vtanh.pop %v649
    %v666 = vmul.f32 %v587, %v650
    %v667 = vmul.f32 %v589, %v651
    %v668 = vmul.f32 %v591, %v652
    %v669 = vmul.f32 %v593, %v653
    %v670 = vmul.f32 %v595, %v654
    %v671 = vmul.f32 %v597, %v655
    %v672 = vmul.f32 %v599, %v656
    %v673 = vmul.f32 %v601, %v657
    %v674 = vmul.f32 %v603, %v658
    %v675 = vmul.f32 %v605, %v659
    %v676 = vmul.f32 %v607, %v660
    %v677 = vmul.f32 %v609, %v661
    %v678 = vmul.f32 %v611, %v662
    %v679 = vmul.f32 %v613, %v663
    %v680 = vmul.f32 %v615, %v664
    %v681 = vmul.f32 %v617, %v665
    %v682 = vmul.f32 %v634, 0.0
    %v683 = vmul.f32 %v635, 0.0
    %v684 = vmul.f32 %v636, 0.0
    %v685 = vmul.f32 %v637, 0.0
    %v686 = vmul.f32 %v638, 0.0
    %v687 = vmul.f32 %v639, 0.0
    %v688 = vmul.f32 %v640, 0.0
    %v689 = vmul.f32 %v641, 0.0
    %v690 = vmul.f32 %v642, 0.0
    %v691 = vmul.f32 %v643, 0.0
    %v692 = vmul.f32 %v644, 0.0
    %v693 = vmul.f32 %v645, 0.0
    %v694 = vmul.f32 %v646, 0.0
    %v695 = vmul.f32 %v647, 0.0
    %v696 = vmul.f32 %v648, 0.0
    %v697 = vmul.f32 %v649, 0.0
    %v698 = vadd.f32 %v682, %v666
    %v699 = vadd.f32 %v683, %v667
    %v700 = vadd.f32 %v684, %v668
    %v701 = vadd.f32 %v685, %v669
    %v702 = vadd.f32 %v686, %v670
    %v703 = vadd.f32 %v687, %v671
    %v704 = vadd.f32 %v688, %v672
    %v705 = vadd.f32 %v689, %v673
    %v706 = vadd.f32 %v690, %v674
    %v707 = vadd.f32 %v691, %v675
    %v708 = vadd.f32 %v692, %v676
    %v709 = vadd.f32 %v693, %v677
    %v710 = vadd.f32 %v694, %v678
    %v711 = vadd.f32 %v695, %v679
    %v712 = vadd.f32 %v696, %v680
    %v713 = vadd.f32 %v697, %v681
    %714 = vst [vmem:[#allocation7] sm:$0xff] %v698
    %715 = vst [vmem:[#allocation7 + $0x8] sm:$0xff] %v699
    %716 = vst [vmem:[#allocation7 + $0x10] sm:$0xff] %v700
    %717 = vst [vmem:[#allocation7 + $0x18] sm:$0xff] %v701
    %718 = vst [vmem:[#allocation7 + $0x20] sm:$0xff] %v702
    %719 = vst [vmem:[#allocation7 + $0x28] sm:$0xff] %v703
    %720 = vst [vmem:[#allocation7 + $0x30] sm:$0xff] %v704
    %721 = vst [vmem:[#allocation7 + $0x38] sm:$0xff] %v705
    %722 = vst [vmem:[#allocation7 + $0x40] sm:$0xff] %v706
    %723 = vst [vmem:[#allocation7 + $0x48] sm:$0xff] %v707
    %724 = vst [vmem:[#allocation7 + $0x50] sm:$0xff] %v708
    %725 = vst [vmem:[#allocation7 + $0x58] sm:$0xff] %v709
    %726 = vst [vmem:[#allocation7 + $0x60] sm:$0xff] %v710
    %727 = vst [vmem:[#allocation7 + $0x68] sm:$0xff] %v711
    %728 = vst [vmem:[#allocation7 + $0x70] sm:$0xff] %v712
    %729 = vst [vmem:[#allocation7 + $0x78] sm:$0xff] %v713
    %730 = vst [vmem:[#allocation7] sm:$0xff] %v666
    %731 = vst [vmem:[#allocation7 + $0x8] sm:$0xff] %v667
    %732 = vst [vmem:[#allocation7 + $0x10] sm:$0xff] %v668
    %733 = vst [vmem:[#allocation7 + $0x18] sm:$0xff] %v669
    %734 = vst [vmem:[#allocation7 + $0x20] sm:$0xff] %v670
    %735 = vst [vmem:[#allocation7 + $0x28] sm:$0xff] %v671
    %736 = vst [vmem:[#allocation7 + $0x30] sm:$0xff] %v672
    %737 = vst [vmem:[#allocation7 + $0x38] sm:$0xff] %v673
    %738 = vst [vmem:[#allocation7 + $0x40] sm:$0xff] %v674
    %739 = vst [vmem:[#allocation7 + $0x48] sm:$0xff] %v675
    %740 = vst [vmem:[#allocation7 + $0x50] sm:$0xff] %v676
    %741 = vst [vmem:[#allocation7 + $0x58] sm:$0xff] %v677
    %742 = vst [vmem:[#allocation7 + $0x60] sm:$0xff] %v678
    %743 = vst [vmem:[#allocation7 + $0x68] sm:$0xff] %v679
    %744 = vst [vmem:[#allocation7 + $0x70] sm:$0xff] %v680
    %745 = vst [vmem:[#allocation7 + $0x78] sm:$0xff] %v681
    %746 = vst [vmem:[#allocation8] sm:$0xff] %v634
    %747 = vst [vmem:[#allocation8 + $0x8] sm:$0xff] %v635
    %748 = vst [vmem:[#allocation8 + $0x10] sm:$0xff] %v636
    %749 = vst [vmem:[#allocation8 + $0x18] sm:$0xff] %v637
    %750 = vst [vmem:[#allocation8 + $0x20] sm:$0xff] %v638
    %751 = vst [vmem:[#allocation8 + $0x28] sm:$0xff] %v639
    %752 = vst [vmem:[#allocation8 + $0x30] sm:$0xff] %v640
    %753 = vst [vmem:[#allocation8 + $0x38] sm:$0xff] %v641
    %754 = vst [vmem:[#allocation8 + $0x40] sm:$0xff] %v642
    %755 = vst [vmem:[#allocation8 + $0x48] sm:$0xff] %v643
    %756 = vst [vmem:[#allocation8 + $0x50] sm:$0xff] %v644
    %757 = vst [vmem:[#allocation8 + $0x58] sm:$0xff] %v645
    %758 = vst [vmem:[#allocation8 + $0x60] sm:$0xff] %v646
    %759 = vst [vmem:[#allocation8 + $0x68] sm:$0xff] %v647
    %760 = vst [vmem:[#allocation8 + $0x70] sm:$0xff] %v648
    %761 = vst [vmem:[#allocation8 + $0x78] sm:$0xff] %v649
    // Predicated region
    $region22: #{tpu_custom_call.1} parent=1 // pred_check
      _
    $region23: #{tpu_custom_call.1} parent=1 // pred_check_branch
      %763 = sbr.rel (0) target = $region25
    $region24: #{tpu_custom_call.1} parent=1 // pred_region
      %s765 = ssub.s32 2048, 2048
      %766 = vsyncadd [#allocation4], %s765
      %s767 = sshll.u32 [#allocation7], 4
      %s768 = int_to_ptr.vmem [resolvable:$true] %s767
      %773 = dma.vmem_to_hbm [thread:$0]  %s768, 2048, %s3, [#allocation4], 128, 128, 8
    $region25: #{tpu_custom_call.1} parent=1 // pred_fallthru
      _
    // Predicated region
    $region26: #{tpu_custom_call.1} parent=1 // pred_check
      _
    $region27: #{tpu_custom_call.1} parent=1 // pred_check_branch
      %775 = sbr.rel (0) target = $region29
    $region28: #{tpu_custom_call.1} parent=1 // pred_region
      %s777 = ssub.s32 2048, 2048
      %778 = vsyncadd [#allocation9], %s777
      %s779 = sshll.u32 [#allocation8], 4
      %s780 = int_to_ptr.vmem [resolvable:$true] %s779
      %785 = dma.vmem_to_hbm [thread:$0]  %s780, 2048, %s4, [#allocation9], 128, 128, 8
    $region29: #{tpu_custom_call.1} parent=1 // pred_fallthru
      _
    // Predicated region
    $region30: #{tpu_custom_call.1} parent=1 // pred_check
      _
    $region31: #{tpu_custom_call.1} parent=1 // pred_check_branch
      %787 = sbr.rel (0) target = $region33
    $region32: #{tpu_custom_call.1} parent=1 // pred_region
      %788 = dma.done [#allocation4], 2048
    $region33: #{tpu_custom_call.1} parent=1 // pred_fallthru
      _
    // Predicated region
    $region34: #{tpu_custom_call.1} parent=1 // pred_check
      _
    $region35: #{tpu_custom_call.1} parent=1 // pred_check_branch
      %790 = sbr.rel (0) target = $region37
    $region36: #{tpu_custom_call.1} parent=1 // pred_region
      %791 = dma.done [#allocation9], 2048
    $region37: #{tpu_custom_call.1} parent=1 // pred_fallthru
      _
    %792 = vsyncpa [#allocation3], 1
    %793 = vsyncpa [#allocation6], 1
    %794 = vsyncpa [#allocation4], 1
    %795 = vsyncpa [#allocation9], 1

</llo_original>
